<compile_context>
chip_gen: v7x
topology: tpu7x:2x2x1
jax: 0.10.0
libtpu: 0.0.40
codegen_flags: <defaults>
</compile_context>

<pallas_src>
import functools

import jax
import jax.numpy as jnp
from jax import lax
from jax.experimental import pallas as pl
from jax.experimental.pallas import tpu as pltpu

S_PAD = 16     # padded state dim (bf16 sublane tile)
H_PAD = 128    # padded hidden dim (lane-dense for the MXU)
A_PAD = 8      # padded action dim for the Q writeback (16x less HBM traffic)
HIDDEN = 64


def _round_up(x, m):
    return ((x + m - 1) // m) * m


def _choose_tile_b(batch):
    """Right-size the batch tile.

    Small (acting) batches: one tile of round_up(B, 8) rows -> no padded work.
    Large (replay) batches: 256/512-row tiles to amortize per-step overhead,
    always leaving grid >= 2 so v7x's two TensorCores are both used.
    """
    b8 = _round_up(batch, 8)          # f32 sublane granularity
    if b8 <= 256:
        return b8
    if b8 >= 1024:
        return 512
    return 256


def _mlp(x_ref, w_ref, b_ref):
    """Shared 3-layer MLP body: returns the (TILE_B, H_PAD) f32 Q slab."""
    x = x_ref[...].astype(jnp.bfloat16)

    # Static, bf16-tile-aligned slices of the packed parameter slabs.
    w1 = w_ref[0:S_PAD, :]                            # (S_PAD, H_PAD) bf16
    w2 = w_ref[S_PAD:S_PAD + H_PAD, :]                # (H_PAD, H_PAD) bf16
    w3 = w_ref[S_PAD + H_PAD:S_PAD + 2 * H_PAD, :]    # (H_PAD, H_PAD) bf16
    b1 = b_ref[0:1, :]                                # (1, H_PAD) f32
    b2 = b_ref[1:2, :]
    b3 = b_ref[2:3, :]

    h1 = jnp.dot(x, w1, preferred_element_type=jnp.float32) + b1
    h1 = jnp.maximum(h1, 0.0)
    h2 = jnp.dot(h1.astype(jnp.bfloat16), w2,
                 preferred_element_type=jnp.float32) + b2
    h2 = jnp.maximum(h2, 0.0)
    q = jnp.dot(h2.astype(jnp.bfloat16), w3,
                preferred_element_type=jnp.float32) + b3
    return q


def _greedy(q, action_size):
    """First-index argmax over the valid action columns (matches torch.argmax
    tie-breaking). Assumes finite Q values (NaN inputs are undefined)."""
    col = lax.broadcasted_iota(jnp.int32, q.shape, 1)
    q_masked = jnp.where(col < action_size, q, jnp.full_like(q, -jnp.inf))
    q_max = jnp.max(q_masked, axis=-1, keepdims=True)
    idx = jnp.where(q_masked == q_max, col, H_PAD)
    return jnp.min(idx, axis=-1, keepdims=True).astype(jnp.int32)


def qnetwork_kernel(x_ref, w_ref, b_ref, q_ref, act_ref, *, action_size):
    q = _mlp(x_ref, w_ref, b_ref)
    q_ref[...] = q[:, :A_PAD]                  # narrow writeback (valid cols [:A])
    act_ref[...] = _greedy(q, action_size)


def qnetwork_act_kernel(x_ref, w_ref, b_ref, act_ref, *, action_size):
    # Acting-path variant: no Q writeback at all.
    q = _mlp(x_ref, w_ref, b_ref)
    act_ref[...] = _greedy(q, action_size)


def _prep_input(state, tile_b):
    B, S = state.shape
    assert S <= S_PAD, f"state_size {S} exceeds S_PAD={S_PAD}"
    b_pad = _round_up(B, tile_b)
    x = jnp.pad(state.astype(jnp.float32), ((0, b_pad - B), (0, S_PAD - S)))
    return x, b_pad


def _in_specs(tile_b):
    return [
        pl.BlockSpec((tile_b, S_PAD), lambda i: (i, 0)),
        pl.BlockSpec((S_PAD + 2 * H_PAD, H_PAD), lambda i: (0, 0)),
        pl.BlockSpec((8, H_PAD), lambda i: (0, 0)),
    ]


def qnetwork_forward(state, packed):
    """state: (B, state_size) f32. Returns (q, actions):
    q: (B, action_size) f32, actions: (B,) int32 (fused greedy argmax)."""
    B, _ = state.shape
    A = packed["action_size"]
    tile_b = _choose_tile_b(B)
    x, b_pad = _prep_input(state, tile_b)

    kernel = functools.partial(qnetwork_kernel, action_size=A)
    q_pad, act_pad = pl.pallas_call(
        kernel,
        out_shape=(
            jax.ShapeDtypeStruct((b_pad, A_PAD), jnp.float32),
            jax.ShapeDtypeStruct((b_pad, 1), jnp.int32),
        ),
        grid=(b_pad // tile_b,),
        in_specs=_in_specs(tile_b),
        out_specs=(
            pl.BlockSpec((tile_b, A_PAD), lambda i: (i, 0)),
            pl.BlockSpec((tile_b, 1), lambda i: (i, 0)),
        ),
        compiler_params=pltpu.CompilerParams(
            dimension_semantics=("parallel",)),
    )(x, packed["w"], packed["b"])

    return q_pad[:B, :A], act_pad[:B, 0]


def qnetwork_act(state, packed):
    """Actions-only acting path: skips the Q writeback entirely."""
    B, _ = state.shape
    A = packed["action_size"]
    tile_b = _choose_tile_b(B)
    x, b_pad = _prep_input(state, tile_b)

    kernel = functools.partial(qnetwork_act_kernel, action_size=A)
    act_pad = pl.pallas_call(
        kernel,
        out_shape=jax.ShapeDtypeStruct((b_pad, 1), jnp.int32),
        grid=(b_pad // tile_b,),
        in_specs=_in_specs(tile_b),
        out_specs=pl.BlockSpec((tile_b, 1), lambda i: (i, 0)),
        compiler_params=pltpu.CompilerParams(
            dimension_semantics=("parallel",)),
    )(x, packed["w"], packed["b"])

    return act_pad[:B, 0]


def init_qnetwork_params(key, state_size, action_size, hidden=HIDDEN):
    """PyTorch-nn.Linear-style init (uniform +-1/sqrt(fan_in)); weights stored
    (in_features, out_features) — transposed vs PyTorch — in f32."""
    def linear(key, fan_in, fan_out):
        kw, kb = jax.random.split(key)
        bound = 1.0 / jnp.sqrt(float(fan_in))
        w = jax.random.uniform(kw, (fan_in, fan_out), jnp.float32,
                               minval=-bound, maxval=bound)
        b = jax.random.uniform(kb, (fan_out,), jnp.float32,
                               minval=-bound, maxval=bound)
        return w, b

    k1, k2, k3 = jax.random.split(key, 3)
    w1, b1 = linear(k1, state_size, hidden)
    w2, b2 = linear(k2, hidden, hidden)
    w3, b3 = linear(k3, hidden, action_size)
    return {"w1": w1, "b1": b1, "w2": w2, "b2": b2, "w3": w3, "b3": b3}


def pack_params(params, state_size, action_size, hidden=HIDDEN):
    """Pack/pad the 6 tensors into one bf16 weight slab + one f32 bias slab."""
    assert state_size <= S_PAD, f"state_size {state_size} > S_PAD={S_PAD}"
    assert action_size <= A_PAD, f"action_size {action_size} > A_PAD={A_PAD}"
    assert hidden <= H_PAD, f"hidden {hidden} > H_PAD={H_PAD}"

    w = jnp.zeros((S_PAD + 2 * H_PAD, H_PAD), jnp.float32)
    w = w.at[:state_size, :hidden].set(params["w1"])
    w = w.at[S_PAD:S_PAD + hidden, :hidden].set(params["w2"])
    w = w.at[S_PAD + H_PAD:S_PAD + H_PAD + hidden, :action_size].set(params["w3"])

    b = jnp.zeros((8, H_PAD), jnp.float32)
    b = b.at[0, :hidden].set(params["b1"])
    b = b.at[1, :hidden].set(params["b2"])
    b = b.at[2, :action_size].set(params["b3"])

    return {"w": w.astype(jnp.bfloat16), "b": b,
            "state_size": state_size, "action_size": action_size}


def qnetwork_ref(state, params):
    """Pure-JAX reference emulating the kernel's bf16-weight/bf16-activation,
    f32-accumulate arithmetic exactly."""
    def bf(v):
        return v.astype(jnp.bfloat16).astype(jnp.float32)
    h1 = jnp.maximum(bf(state) @ bf(params["w1"]) + params["b1"], 0.0)
    h2 = jnp.maximum(bf(h1) @ bf(params["w2"]) + params["b2"], 0.0)
    return bf(h2) @ bf(params["w3"]) + params["b3"]


if __name__ == "__main__":
    # CartPole-like dims: state_size=4, action_size=2.
    state_size, action_size = 4, 2

    key = jax.random.PRNGKey(0)
    kp, kx1, kx2 = jax.random.split(key, 3)
    params = init_qnetwork_params(kp, state_size, action_size)
    packed = pack_params(params, state_size, action_size)

    # --- small acting batch (single right-sized 8-row tile, grid=1) ---
    state_small = jax.random.normal(kx1, (8, state_size), jnp.float32)
    q, actions = qnetwork_forward(state_small, packed)
    q = jax.block_until_ready(q)
    actions = jax.block_until_ready(actions)
    acts_only = jax.block_until_ready(qnetwork_act(state_small, packed))

    q_ref = qnetwork_ref(state_small, params)
    assert q.shape == (8, action_size)
    assert actions.shape == (8,)
    assert jnp.allclose(q, q_ref, atol=1e-3, rtol=1e-3), "Q mismatch (small batch)"
    assert jnp.array_equal(actions, jnp.argmax(q_ref, axis=-1)), "argmax mismatch"
    assert jnp.array_equal(acts_only, actions), "act-only path mismatch"

    # --- replay-style batch (TILE_B=256, grid=2 -> both v7x TCs exercised) ---
    state_big = jax.random.normal(kx2, (300, state_size), jnp.float32)
    q_b, actions_b = qnetwork_forward(state_big, packed)
    q_b = jax.block_until_ready(q_b)
    actions_b = jax.block_until_ready(actions_b)

    q_ref_b = qnetwork_ref(state_big, params)
    assert q_b.shape == (300, action_size)
    assert jnp.allclose(q_b, q_ref_b, atol=1e-3, rtol=1e-3), "Q mismatch (big batch)"
    assert jnp.array_equal(actions_b, jnp.argmax(q_b, axis=-1)), "argmax mismatch (big)"

    print("KERNEL_OK")
</pallas_src>

<mosaic_0001>
module attributes {stable_mosaic.version = 11 : i64} {
  func.func @qnetwork_kernel(%arg0: i32, %arg1: memref<8x16xf32, #tpu.memory_space<vmem>>, %arg2: memref<272x128xbf16, #tpu.memory_space<vmem>>, %arg3: memref<8x128xf32, #tpu.memory_space<vmem>>, %arg4: memref<8x8xf32, #tpu.memory_space<vmem>>, %arg5: memref<8x1xi32, #tpu.memory_space<vmem>>) attributes {dimension_semantics = [#tpu.dimension_semantics<parallel>], iteration_bounds = array<i64: 1>, scalar_prefetch = 0 : i64, scratch_operands = 0 : i64, tpu.core_type = #tpu.core_type<tc>, window_params = [{transform_indices = @transform_0, window_bounds = array<i64: 8, 16>}, {pipeline_mode = #tpu.pipeline_mode<synchronous>, transform_indices = @transform_1, window_bounds = array<i64: 272, 128>}, {pipeline_mode = #tpu.pipeline_mode<synchronous>, transform_indices = @transform_2, window_bounds = array<i64: 8, 128>}, {transform_indices = @transform_3, window_bounds = array<i64: 8, 8>}, {transform_indices = @transform_4, window_bounds = array<i64: 8, 1>}]} {
    %c0 = arith.constant 0 : index
    %c0_0 = arith.constant 0 : index
    %0 = vector.load %arg1[%c0, %c0_0] : memref<8x16xf32, #tpu.memory_space<vmem>>, vector<8x16xf32>
    %1 = arith.truncf %0 : vector<8x16xf32> to vector<8x16xbf16>
    %c0_1 = arith.constant 0 : index
    %c0_2 = arith.constant 0 : index
    %2 = vector.load %arg2[%c0_1, %c0_2] : memref<272x128xbf16, #tpu.memory_space<vmem>>, vector<16x128xbf16>
    %c16 = arith.constant 16 : index
    %c0_3 = arith.constant 0 : index
    %3 = vector.load %arg2[%c16, %c0_3] : memref<272x128xbf16, #tpu.memory_space<vmem>>, vector<128x128xbf16>
    %c144 = arith.constant 144 : index
    %c0_4 = arith.constant 0 : index
    %4 = vector.load %arg2[%c144, %c0_4] : memref<272x128xbf16, #tpu.memory_space<vmem>>, vector<128x128xbf16>
    %c0_5 = arith.constant 0 : index
    %c0_6 = arith.constant 0 : index
    %5 = vector.load %arg3[%c0_5, %c0_6] : memref<8x128xf32, #tpu.memory_space<vmem>>, vector<1x128xf32>
    %c1 = arith.constant 1 : index
    %c0_7 = arith.constant 0 : index
    %6 = vector.load %arg3[%c1, %c0_7] : memref<8x128xf32, #tpu.memory_space<vmem>>, vector<1x128xf32>
    %c2 = arith.constant 2 : index
    %c0_8 = arith.constant 0 : index
    %7 = vector.load %arg3[%c2, %c0_8] : memref<8x128xf32, #tpu.memory_space<vmem>>, vector<1x128xf32>
    %cst = arith.constant dense<0.000000e+00> : vector<8x128xf32>
    %8 = tpu.matmul %1, %2, %cst {dimension_numbers = #tpu.dot_dimension_numbers<[1], [0], [0], [1], [0, 0, 1, 1], [], []>} : vector<8x16xbf16>, vector<16x128xbf16>, vector<8x128xf32> -> vector<8x128xf32>
    %9 = vector.broadcast %5 : vector<1x128xf32> to vector<8x128xf32>
    %10 = arith.addf %8, %9 : vector<8x128xf32>
    %cst_9 = arith.constant 0.000000e+00 : f32
    %11 = vector.broadcast %cst_9 : f32 to vector<8x128xf32>
    %12 = arith.maximumf %10, %11 : vector<8x128xf32>
    %13 = arith.truncf %12 : vector<8x128xf32> to vector<8x128xbf16>
    %cst_10 = arith.constant dense<0.000000e+00> : vector<8x128xf32>
    %14 = tpu.matmul %13, %3, %cst_10 {dimension_numbers = #tpu.dot_dimension_numbers<[1], [0], [0], [1], [0, 0, 1, 1], [], []>} : vector<8x128xbf16>, vector<128x128xbf16>, vector<8x128xf32> -> vector<8x128xf32>
    %15 = vector.broadcast %6 : vector<1x128xf32> to vector<8x128xf32>
    %16 = arith.addf %14, %15 : vector<8x128xf32>
    %cst_11 = arith.constant 0.000000e+00 : f32
    %17 = vector.broadcast %cst_11 : f32 to vector<8x128xf32>
    %18 = arith.maximumf %16, %17 : vector<8x128xf32>
    %19 = arith.truncf %18 : vector<8x128xf32> to vector<8x128xbf16>
    %cst_12 = arith.constant dense<0.000000e+00> : vector<8x128xf32>
    %20 = tpu.matmul %19, %4, %cst_12 {dimension_numbers = #tpu.dot_dimension_numbers<[1], [0], [0], [1], [0, 0, 1, 1], [], []>} : vector<8x128xbf16>, vector<128x128xbf16>, vector<8x128xf32> -> vector<8x128xf32>
    %21 = vector.broadcast %7 : vector<1x128xf32> to vector<8x128xf32>
    %22 = arith.addf %20, %21 : vector<8x128xf32>
    %23 = vector.extract_strided_slice %22 {offsets = [0, 0], sizes = [8, 8], strides = [1, 1]} : vector<8x128xf32> to vector<8x8xf32>
    %c0_13 = arith.constant 0 : index
    %c0_14 = arith.constant 0 : index
    %24 = vector.load %arg4[%c0_13, %c0_14] : memref<8x8xf32, #tpu.memory_space<vmem>>, vector<8x8xf32>
    tpu.vector_store %arg4[%c0_13, %c0_14], %23 {strides = array<i32>} : memref<8x8xf32, #tpu.memory_space<vmem>>, vector<8x8xf32>,
    %25 = tpu.iota {dimensions = array<i32: 1>} : vector<8x128xi32>
    %c2_i32 = arith.constant 2 : i32
    %26 = vector.broadcast %c2_i32 : i32 to vector<8x128xi32>
    %27 = arith.cmpi slt, %25, %26 : vector<8x128xi32>
    %cst_15 = arith.constant 0xFF800000 : f32
    %28 = vector.broadcast %cst_15 : f32 to vector<8x128xf32>
    %29 = arith.select %27, %22, %28 : vector<8x128xi1>, vector<8x128xf32>
    %cst_16 = arith.constant dense<0xFF800000> : vector<8xf32>
    %30 = vector.multi_reduction <maximumf>, %29, %cst_16 [1] : vector<8x128xf32> to vector<8xf32>
    %31 = vector.shape_cast %30 : vector<8xf32> to vector<8x1xf32>
    %32 = vector.broadcast %31 : vector<8x1xf32> to vector<8x128xf32>
    %33 = arith.cmpf oeq, %29, %32 : vector<8x128xf32>
    %c128_i32 = arith.constant 128 : i32
    %34 = vector.broadcast %c128_i32 : i32 to vector<8x128xi32>
    %35 = arith.select %33, %25, %34 : vector<8x128xi1>, vector<8x128xi32>
    %cst_17 = arith.constant dense<2147483647> : vector<8xi32>
    %36 = vector.multi_reduction <minsi>, %35, %cst_17 [1] : vector<8x128xi32> to vector<8xi32>
    %37 = vector.shape_cast %36 : vector<8xi32> to vector<8x1xi32>
    %c0_18 = arith.constant 0 : index
    %c0_19 = arith.constant 0 : index
    %38 = vector.load %arg5[%c0_18, %c0_19] : memref<8x1xi32, #tpu.memory_space<vmem>>, vector<8x1xi32>
    tpu.vector_store %arg5[%c0_18, %c0_19], %37 {strides = array<i32>} : memref<8x1xi32, #tpu.memory_space<vmem>>, vector<8x1xi32>,
    return
  }
  func.func @transform_0(%arg0: i32) -> (i32, i32) {
    %c0_i32 = arith.constant 0 : i32
    %c0_i32_0 = arith.constant 0 : i32
    return %arg0, %c0_i32 : i32, i32
  }
  func.func @transform_1(%arg0: i32) -> (i32, i32) {
    %c0_i32 = arith.constant 0 : i32
    %c0_i32_0 = arith.constant 0 : i32
    %c0_i32_1 = arith.constant 0 : i32
    return %c0_i32, %c0_i32_0 : i32, i32
  }
  func.func @transform_2(%arg0: i32) -> (i32, i32) {
    %c0_i32 = arith.constant 0 : i32
    %c0_i32_0 = arith.constant 0 : i32
    %c0_i32_1 = arith.constant 0 : i32
    return %c0_i32, %c0_i32_0 : i32, i32
  }
  func.func @transform_3(%arg0: i32) -> (i32, i32) {
    %c0_i32 = arith.constant 0 : i32
    %c0_i32_0 = arith.constant 0 : i32
    return %arg0, %c0_i32 : i32, i32
  }
  func.func @transform_4(%arg0: i32) -> (i32, i32) {
    %c0_i32 = arith.constant 0 : i32
    %c0_i32_0 = arith.constant 0 : i32
    return %arg0, %c0_i32 : i32, i32
  }
}

</mosaic_0001>

<llo_original>
// kernel: tpu_custom_call.1
$region0: #{tpu_custom_call.1}
  #allocation0 [shape = 'u32[]', space=smem, size = 0x4, offset = 0x4, fixed_abs, tag = 'smem constant byte address 0x4 - core index']
  #allocation1 [shape = 'u32[144,128]{1,0:T(1,128)}', space=vmem, size = 0x12000, scoped, tag = 'internal scratch']
  %s0 = inlined_call_operand.hbm [shape: f32[8,16], index: 0, kind: input, shape index: {}]
  %s1 = inlined_call_operand.hbm [shape: bf16[272,128], index: 1, kind: input, shape index: {}]
  %s2 = inlined_call_operand.hbm [shape: f32[8,128], index: 2, kind: input, shape index: {}]
  %s3 = inlined_call_operand.hbm [shape: f32[8,8], index: 3, kind: output, shape index: {0}]
  %s4 = inlined_call_operand.vmem [shape: s32[8,1], index: 4, kind: output, shape index: {1}]
  %5 = xla_tuple %s3, %s4
  %s6 = sld [smem:[#allocation0]]
  $region42: #{tpu_custom_call.1} parent=0
    _
  %s8 = ssub.s32 1, %s6
  %s9 = scalar_select 0, %s8, %s6
  $region1: #{tpu_custom_call.1} parent=0
    #allocation2 [shape = 'u8[4096]{0}', space=vmem, size = 0x1000, scoped, tag = 'input window, operand 0, single buffered']
    #allocation3 [shape = 's32[1]{0}', space=sflag, size = 0x4, scoped, tag = 'scoped memory for tpu_custom_call.1']
    #allocation4 [shape = 's32[1]{0}', space=sflag, size = 0x4, scoped, tag = 'scoped memory for tpu_custom_call.1']
    #allocation5 [shape = 'u8[69632]{0}', space=vmem, size = 0x11000, scoped, tag = 'input window, operand 1, single buffered']
    #allocation6 [shape = 's32[1]{0}', space=sflag, size = 0x4, scoped, tag = 'scoped memory for tpu_custom_call.1']
    #allocation7 [shape = 'u8[4096]{0}', space=vmem, size = 0x1000, scoped, tag = 'input window, operand 2, single buffered']
    #allocation8 [shape = 'u8[4096]{0}', space=vmem, size = 0x1000, scoped, tag = 'output window, operand 0, single buffered']
    %10 = vsyncpa [#allocation3], 0
    %11 = vsyncpa [#allocation6], 0
    %12 = vsyncpa [#allocation4], 0
    // Predicated region
    $region2: #{tpu_custom_call.1} parent=1 // pred_check
      _
    $region3: #{tpu_custom_call.1} parent=1 // pred_check_branch
      %14 = sbr.rel (0) target = $region5
    $region4: #{tpu_custom_call.1} parent=1 // pred_region
      %s16 = ssub.s32 128, 128
      %17 = vsyncadd [#allocation3], %s16
      %s19 = sshll.u32 [#allocation2], 4
      %s20 = int_to_ptr.vmem [resolvable:$true] %s19
      %22 = dma.hbm_to_vmem [thread:$0]  %s0, 128, %s20, [#allocation3]
    $region5: #{tpu_custom_call.1} parent=1 // pred_fallthru
      _
    // Predicated region
    $region6: #{tpu_custom_call.1} parent=1 // pred_check
      _
    $region7: #{tpu_custom_call.1} parent=1 // pred_check_branch
      %24 = sbr.rel (0) target = $region9
    $region8: #{tpu_custom_call.1} parent=1 // pred_region
      %s26 = ssub.s32 2176, 2176
      %27 = vsyncadd [#allocation6], %s26
      %s28 = sshll.u32 [#allocation5], 4
      %s29 = int_to_ptr.vmem [resolvable:$true] %s28
      %34 = dma.hbm_to_vmem [thread:$0]  %s1, 2176, %s29, [#allocation6], 64, 64, 4
    $region9: #{tpu_custom_call.1} parent=1 // pred_fallthru
      _
    // Predicated region
    $region10: #{tpu_custom_call.1} parent=1 // pred_check
      _
    $region11: #{tpu_custom_call.1} parent=1 // pred_check_branch
      %36 = sbr.rel (0) target = $region13
    $region12: #{tpu_custom_call.1} parent=1 // pred_region
      %s38 = ssub.s32 128, 128
      %39 = vsyncadd [#allocation6], %s38
      %s41 = sshll.u32 [#allocation7], 4
      %s42 = int_to_ptr.vmem [resolvable:$true] %s41
      %44 = dma.hbm_to_vmem [thread:$0]  %s2, 128, %s42, [#allocation6]
    $region13: #{tpu_custom_call.1} parent=1 // pred_fallthru
      _
    // Predicated region
    $region14: #{tpu_custom_call.1} parent=1 // pred_check
      _
    $region15: #{tpu_custom_call.1} parent=1 // pred_check_branch
      %46 = sbr.rel (0) target = $region17
    $region16: #{tpu_custom_call.1} parent=1 // pred_region
      %47 = dma.done [#allocation3], 128
    $region17: #{tpu_custom_call.1} parent=1 // pred_fallthru
      _
    // Predicated region
    $region18: #{tpu_custom_call.1} parent=1 // pred_check
      _
    $region19: #{tpu_custom_call.1} parent=1 // pred_check_branch
      %49 = sbr.rel (0) target = $region21
    $region20: #{tpu_custom_call.1} parent=1 // pred_region
      %50 = dma.done [#allocation6], 2176
    $region21: #{tpu_custom_call.1} parent=1 // pred_fallthru
      _
    // Predicated region
    $region22: #{tpu_custom_call.1} parent=1 // pred_check
      _
    $region23: #{tpu_custom_call.1} parent=1 // pred_check_branch
      %52 = sbr.rel (0) target = $region25
    $region24: #{tpu_custom_call.1} parent=1 // pred_region
      %53 = dma.done [#allocation6], 128
    $region25: #{tpu_custom_call.1} parent=1 // pred_fallthru
      _
    %v55 = vld [vmem:[#allocation2] sm:$0xff]
    %v56 = vpack.c.bf16 %v55, %v55
    %v57 = vld [vmem:[#allocation5] sm:$0xf]
    %v58 = vld [vmem:[#allocation5 + $0x4] sm:$0xf]
    %v59 = vld [vmem:[#allocation5 + $0x8] sm:$0xf]
    %v60 = vld [vmem:[#allocation5 + $0xc] sm:$0xf]
    %v61 = vld [vmem:[#allocation5 + $0x10] sm:$0xf]
    %v62 = vld [vmem:[#allocation5 + $0x14] sm:$0xf]
    %v63 = vld [vmem:[#allocation5 + $0x18] sm:$0xf]
    %v64 = vld [vmem:[#allocation5 + $0x1c] sm:$0xf]
    %v65 = vld [vmem:[#allocation5 + $0x20] sm:$0xf]
    %v66 = vld [vmem:[#allocation5 + $0x24] sm:$0xf]
    %v67 = vld [vmem:[#allocation5 + $0x28] sm:$0xf]
    %v68 = vld [vmem:[#allocation5 + $0x2c] sm:$0xf]
    %v69 = vld [vmem:[#allocation5 + $0x30] sm:$0xf]
    %v70 = vld [vmem:[#allocation5 + $0x34] sm:$0xf]
    %v71 = vld [vmem:[#allocation5 + $0x38] sm:$0xf]
    %v72 = vld [vmem:[#allocation5 + $0x3c] sm:$0xf]
    %v73 = vld [vmem:[#allocation5 + $0x40] sm:$0xf]
    %v74 = vld [vmem:[#allocation5 + $0x44] sm:$0xf]
    %v75 = vld [vmem:[#allocation5 + $0x48] sm:$0xf]
    %v76 = vld [vmem:[#allocation5 + $0x4c] sm:$0xf]
    %v77 = vld [vmem:[#allocation5 + $0x50] sm:$0xf]
    %v78 = vld [vmem:[#allocation5 + $0x54] sm:$0xf]
    %v79 = vld [vmem:[#allocation5 + $0x58] sm:$0xf]
    %v80 = vld [vmem:[#allocation5 + $0x5c] sm:$0xf]
    %v81 = vld [vmem:[#allocation5 + $0x60] sm:$0xf]
    %v82 = vld [vmem:[#allocation5 + $0x64] sm:$0xf]
    %v83 = vld [vmem:[#allocation5 + $0x68] sm:$0xf]
    %v84 = vld [vmem:[#allocation5 + $0x6c] sm:$0xf]
    %v85 = vld [vmem:[#allocation5 + $0x70] sm:$0xf]
    %v86 = vld [vmem:[#allocation5 + $0x74] sm:$0xf]
    %v87 = vld [vmem:[#allocation5 + $0x78] sm:$0xf]
    %v88 = vld [vmem:[#allocation5 + $0x7c] sm:$0xf]
    %v89 = vld [vmem:[#allocation5 + $0x80] sm:$0xf]
    %v90 = vld [vmem:[#allocation5 + $0x84] sm:$0xf]
    %v91 = vld [vmem:[#allocation7] sm:$0x1]
    %v92 = vld [vmem:[#allocation7 + $0x1] sm:$0x1]
    %v93 = vld [vmem:[#allocation7 + $0x2] sm:$0x1]
    %v94 = vlaneseq
    %v95 = vshrl.u32 %v94, 7
    %v96 = vsub.s32 0, %v95
    %v97 = vrot.slane %v91, %v96
    %v100 = vunpack.c.l.b16 %v57
    %v101 = vunpack.c.l.b16 %v58
    %v102 = vpack.c.b16 %v101, %v100
    %vm104 = vcmask 130048
    %v106 = vsel %vm104, %v56, 0
    %108 = vmatprep.subr.bf16.mxu0 0
    %109 = vmatpush1.bf16.msra.mxu0 %v102
    %110 = vmatprep.subr.bf16.mxu0 0
    %111 = vmatpush1.bf16.msra.mxu0 0
    %112 = vmatprep.subr.bf16.mxu0 0
    %113 = vmatpush1.bf16.msra.mxu0 0
    %114 = vmatprep.subr.bf16.mxu0 0
    %115 = vmatpush1.bf16.msra.mxu0 0
    %116 = vmatprep.subr.bf16.mxu0 0
    %117 = vmatpush1.bf16.msra.mxu0 0
    %118 = vmatprep.subr.bf16.mxu0 0
    %119 = vmatpush1.bf16.msra.mxu0 0
    %120 = vmatprep.subr.bf16.mxu0 0
    %121 = vmatpush1.bf16.msra.mxu0 0
    %122 = vmatprep.subr.bf16.mxu0 0
    %123 = vmatpush1.bf16.msra.mxu0 0
    %124 = vmatprep.subr.bf16.mxu0 0
    %125 = vmatpush1.bf16.msra.mxu0 0
    %126 = vmatprep.subr.bf16.mxu0 0
    %127 = vmatpush1.bf16.msra.mxu0 0
    %128 = vmatprep.subr.bf16.mxu0 0
    %129 = vmatpush1.bf16.msra.mxu0 0
    %130 = vmatprep.subr.bf16.mxu0 0
    %131 = vmatpush1.bf16.msra.mxu0 0
    %132 = vmatprep.subr.bf16.mxu0 0
    %133 = vmatpush1.bf16.msra.mxu0 0
    %134 = vmatprep.subr.bf16.mxu0 0
    %135 = vmatpush1.bf16.msra.mxu0 0
    %136 = vmatprep.subr.bf16.mxu0 0
    %137 = vmatpush1.bf16.msra.mxu0 0
    %138 = vmatprep.subr.bf16.mxu0 0
    %139 = vmatpush1.bf16.msra.mxu0 0
    %140 = vmatprep.mubr.bf16.mxu0 0
    %141 = vmatmul.mubr.bf16.gmra.mrb[0].mxu0 %v106
    %v142 = vpop.f32.mrb[0].mxu0
    %v143 = vadd.f32 %v97, %v142
    %v144 = vpop.f32.mrb[0].mxu0
    %v145 = vpop.f32.mrb[0].mxu0
    %v146 = vpop.f32.mrb[0].mxu0
    %147 = vdwg.mxu0
    %v148 = vmax.f32 %v143, 0.0
    %v149 = vpack.c.bf16 %v148, %v148
    %v150 = vlaneseq
    %v151 = vshrl.u32 %v150, 7
    %v152 = vsub.s32 0, %v151
    %v153 = vrot.slane %v92, %v152
    %v170 = vunpack.c.l.b16 %v59
    %v171 = vunpack.c.l.b16 %v60
    %v172 = vunpack.c.l.b16 %v61
    %v173 = vunpack.c.l.b16 %v62
    %v174 = vunpack.c.l.b16 %v63
    %v175 = vunpack.c.l.b16 %v64
    %v176 = vunpack.c.l.b16 %v65
    %v177 = vunpack.c.l.b16 %v66
    %v178 = vunpack.c.l.b16 %v67
    %v179 = vunpack.c.l.b16 %v68
    %v180 = vunpack.c.l.b16 %v69
    %v181 = vunpack.c.l.b16 %v70
    %v182 = vunpack.c.l.b16 %v71
    %v183 = vunpack.c.l.b16 %v72
    %v184 = vunpack.c.l.b16 %v73
    %v185 = vunpack.c.l.b16 %v74
    %v186 = vpack.c.b16 %v171, %v170
    %v187 = vpack.c.b16 %v173, %v172
    %v188 = vpack.c.b16 %v175, %v174
    %v189 = vpack.c.b16 %v177, %v176
    %v190 = vpack.c.b16 %v179, %v178
    %v191 = vpack.c.b16 %v181, %v180
    %v192 = vpack.c.b16 %v183, %v182
    %v193 = vpack.c.b16 %v185, %v184
    %202 = vmatprep.subr.bf16.mxu0 0
    %203 = vmatpush1.bf16.msra.mxu0 %v186
    %204 = vmatprep.subr.bf16.mxu0 0
    %205 = vmatpush1.bf16.msra.mxu0 %v187
    %206 = vmatprep.subr.bf16.mxu0 0
    %207 = vmatpush1.bf16.msra.mxu0 %v188
    %208 = vmatprep.subr.bf16.mxu0 0
    %209 = vmatpush1.bf16.msra.mxu0 %v189
    %210 = vmatprep.subr.bf16.mxu0 0
    %211 = vmatpush1.bf16.msra.mxu0 %v190
    %212 = vmatprep.subr.bf16.mxu0 0
    %213 = vmatpush1.bf16.msra.mxu0 %v191
    %214 = vmatprep.subr.bf16.mxu0 0
    %215 = vmatpush1.bf16.msra.mxu0 %v192
    %216 = vmatprep.subr.bf16.mxu0 0
    %217 = vmatpush1.bf16.msra.mxu0 %v193
    %218 = vmatprep.subr.bf16.mxu0 0
    %219 = vmatpush1.bf16.msra.mxu0 0
    %220 = vmatprep.subr.bf16.mxu0 0
    %221 = vmatpush1.bf16.msra.mxu0 0
    %222 = vmatprep.subr.bf16.mxu0 0
    %223 = vmatpush1.bf16.msra.mxu0 0
    %224 = vmatprep.subr.bf16.mxu0 0
    %225 = vmatpush1.bf16.msra.mxu0 0
    %226 = vmatprep.subr.bf16.mxu0 0
    %227 = vmatpush1.bf16.msra.mxu0 0
    %228 = vmatprep.subr.bf16.mxu0 0
    %229 = vmatpush1.bf16.msra.mxu0 0
    %230 = vmatprep.subr.bf16.mxu0 0
    %231 = vmatpush1.bf16.msra.mxu0 0
    %232 = vmatprep.subr.bf16.mxu0 0
    %233 = vmatpush1.bf16.msra.mxu0 0
    %234 = vmatprep.mubr.bf16.mxu0 0
    %235 = vmatmul.mubr.bf16.gmra.mrb[0].mxu0 %v149
    %v236 = vpop.f32.mrb[0].mxu0
    %v237 = vadd.f32 %v153, %v236
    %v238 = vpop.f32.mrb[0].mxu0
    %v239 = vpop.f32.mrb[0].mxu0
    %v240 = vpop.f32.mrb[0].mxu0
    %241 = vdwg.mxu0
    %v242 = vmax.f32 %v237, 0.0
    %v243 = vpack.c.bf16 %v242, %v242
    %v244 = vlaneseq
    %v245 = vshrl.u32 %v244, 7
    %v246 = vsub.s32 0, %v245
    %v247 = vrot.slane %v93, %v246
    %v264 = vunpack.c.l.b16 %v75
    %v265 = vunpack.c.l.b16 %v76
    %v266 = vunpack.c.l.b16 %v77
    %v267 = vunpack.c.l.b16 %v78
    %v268 = vunpack.c.l.b16 %v79
    %v269 = vunpack.c.l.b16 %v80
    %v270 = vunpack.c.l.b16 %v81
    %v271 = vunpack.c.l.b16 %v82
    %v272 = vunpack.c.l.b16 %v83
    %v273 = vunpack.c.l.b16 %v84
    %v274 = vunpack.c.l.b16 %v85
    %v275 = vunpack.c.l.b16 %v86
    %v276 = vunpack.c.l.b16 %v87
    %v277 = vunpack.c.l.b16 %v88
    %v278 = vunpack.c.l.b16 %v89
    %v279 = vunpack.c.l.b16 %v90
    %v280 = vpack.c.b16 %v265, %v264
    %v281 = vpack.c.b16 %v267, %v266
    %v282 = vpack.c.b16 %v269, %v268
    %v283 = vpack.c.b16 %v271, %v270
    %v284 = vpack.c.b16 %v273, %v272
    %v285 = vpack.c.b16 %v275, %v274
    %v286 = vpack.c.b16 %v277, %v276
    %v287 = vpack.c.b16 %v279, %v278
    %296 = vmatprep.subr.bf16.mxu0 0
    %297 = vmatpush1.bf16.msra.mxu0 %v280
    %298 = vmatprep.subr.bf16.mxu0 0
    %299 = vmatpush1.bf16.msra.mxu0 %v281
    %300 = vmatprep.subr.bf16.mxu0 0
    %301 = vmatpush1.bf16.msra.mxu0 %v282
    %302 = vmatprep.subr.bf16.mxu0 0
    %303 = vmatpush1.bf16.msra.mxu0 %v283
    %304 = vmatprep.subr.bf16.mxu0 0
    %305 = vmatpush1.bf16.msra.mxu0 %v284
    %306 = vmatprep.subr.bf16.mxu0 0
    %307 = vmatpush1.bf16.msra.mxu0 %v285
    %308 = vmatprep.subr.bf16.mxu0 0
    %309 = vmatpush1.bf16.msra.mxu0 %v286
    %310 = vmatprep.subr.bf16.mxu0 0
    %311 = vmatpush1.bf16.msra.mxu0 %v287
    %312 = vmatprep.subr.bf16.mxu0 0
    %313 = vmatpush1.bf16.msra.mxu0 0
    %314 = vmatprep.subr.bf16.mxu0 0
    %315 = vmatpush1.bf16.msra.mxu0 0
    %316 = vmatprep.subr.bf16.mxu0 0
    %317 = vmatpush1.bf16.msra.mxu0 0
    %318 = vmatprep.subr.bf16.mxu0 0
    %319 = vmatpush1.bf16.msra.mxu0 0
    %320 = vmatprep.subr.bf16.mxu0 0
    %321 = vmatpush1.bf16.msra.mxu0 0
    %322 = vmatprep.subr.bf16.mxu0 0
    %323 = vmatpush1.bf16.msra.mxu0 0
    %324 = vmatprep.subr.bf16.mxu0 0
    %325 = vmatpush1.bf16.msra.mxu0 0
    %326 = vmatprep.subr.bf16.mxu0 0
    %327 = vmatpush1.bf16.msra.mxu0 0
    %328 = vmatprep.mubr.bf16.mxu0 0
    %329 = vmatmul.mubr.bf16.gmra.mrb[0].mxu0 %v243
    %v330 = vpop.f32.mrb[0].mxu0
    %v331 = vadd.f32 %v247, %v330
    %v332 = vpop.f32.mrb[0].mxu0
    %v333 = vpop.f32.mrb[0].mxu0
    %v334 = vpop.f32.mrb[0].mxu0
    %335 = vdwg.mxu0
    %vm336 = vcmask 64512
    %337 = vst.msk [vmem:[#allocation8] sm:$0xff] %vm336, %v331
    %v338 = vlaneseq
    %v339 = vand.u32 %v338, 127
    %vm340 = vcmp.lt.s32.totalorder %v339, 2
    %v341 = vsel %vm340, %v331, -inf
    %342 = vmax.xlane.f32.xlu0 %v341
    %v343 = vpop.xlane.xlu0 %342
    %vm344 = vcmp.eq.f32.partialorder %v341, %v343
    %v345 = vsel %vm344, %v339, 128
    %v346 = vand.u32 %v345, 65535
    %v347 = vshra.s32 %v345, 16
    %v348 = vcvt.s32.f32 %v346
    %v349 = vcvt.s32.f32 %v347
    %350 = vmin.xlane.f32.xlu0 %v349
    %v351 = vpop.xlane.xlu0 %350
    %vm352 = vcmp.eq.f32.partialorder %v349, %v351
    %v353 = vsel %vm352, %v348, inf
    %354 = vmin.xlane.f32.xlu0 %v353
    %v355 = vpop.xlane.xlu0 %354
    %v356 = vcvt.f32.s32 %v355
    %v357 = vcvt.f32.s32 %v351
    %v358 = vshll.u32 %v357, 16
    %v359 = vadd.s32 %v358, %v356
    %vm360 = vcmask 7168
    %361 = vst.msk [vmem:[%s4] sm:$0xff] %vm360, %v359
    // Predicated region
    $region26: #{tpu_custom_call.1} parent=1 // pred_check
      _
    $region27: #{tpu_custom_call.1} parent=1 // pred_check_branch
      %363 = sbr.rel (0) target = $region29
    $region28: #{tpu_custom_call.1} parent=1 // pred_region
      %s365 = ssub.s32 128, 128
      %366 = vsyncadd [#allocation4], %s365
      %s368 = sshll.u32 [#allocation8], 4
      %s369 = int_to_ptr.vmem [resolvable:$true] %s368
      %371 = dma.vmem_to_hbm [thread:$0]  %s369, 128, %s3, [#allocation4]
    $region29: #{tpu_custom_call.1} parent=1 // pred_fallthru
      _
    // Predicated region
    $region30: #{tpu_custom_call.1} parent=1 // pred_check
      _
    $region31: #{tpu_custom_call.1} parent=1 // pred_check_branch
      %373 = sbr.rel (0) target = $region33
    $region32: #{tpu_custom_call.1} parent=1 // pred_region
      _
    $region33: #{tpu_custom_call.1} parent=1 // pred_fallthru
      _
    // Predicated region
    $region34: #{tpu_custom_call.1} parent=1 // pred_check
      _
    $region35: #{tpu_custom_call.1} parent=1 // pred_check_branch
      %375 = sbr.rel (0) target = $region37
    $region36: #{tpu_custom_call.1} parent=1 // pred_region
      %376 = dma.done [#allocation4], 128
    $region37: #{tpu_custom_call.1} parent=1 // pred_fallthru
      _
    // Predicated region
    $region38: #{tpu_custom_call.1} parent=1 // pred_check
      _
    $region39: #{tpu_custom_call.1} parent=1 // pred_check_branch
      %378 = sbr.rel (0) target = $region41
    $region40: #{tpu_custom_call.1} parent=1 // pred_region
      _
    $region41: #{tpu_custom_call.1} parent=1 // pred_fallthru
      _
    %379 = vsyncpa [#allocation3], 1
    %380 = vsyncpa [#allocation6], 1
    %381 = vsyncpa [#allocation4], 1

</llo_original>
